<compile_context>
chip_gen: v7x
topology: tpu7x:2x2x1
jax: 0.10.0
libtpu: 0.0.40
codegen_flags: <defaults>
</compile_context>

<pallas_src>
import jax
import jax.numpy as jnp
from jax.experimental import pallas as pl
from jax.experimental.pallas import tpu as pltpu

HIDDEN = 128
MAX_TM = 2048         # max batch rows per grid step (multiple of 8)


def _round_up(x, m):
    return (x + m - 1) // m * m


def _is_multi_tensorcore_chip():
    """True only for chips with >1 TensorCore per device (v7x). Falls back to
    False (single big tile) if detection fails — always the safe choice."""
    try:
        kind = jax.devices()[0].device_kind.lower()
        return "v7" in kind
    except Exception:
        return False


_MULTI_TC = _is_multi_tensorcore_chip()


def _invariant_spec(shape):
    """BlockSpec for a grid-invariant (weight/bias) operand.

    Invariant blocks don't need double-buffering; request a single buffer when
    the installed Pallas supports pipeline_mode (saves a little VMEM)."""
    index_map = lambda i: (0, 0)
    if hasattr(pl, "Buffered"):
        try:
            return pl.BlockSpec(shape, index_map, pipeline_mode=pl.Buffered(1))
        except TypeError:
            pass
    return pl.BlockSpec(shape, index_map)


def mlp_kernel(z_ref, w1_ref, b1_ref, w2_ref, b2_ref, w3_ref, b3_ref,
               w4p_ref, b4_ref, o_ref):
    """Fused 4-layer MLP for one (TM, 2) batch tile."""
    z = z_ref[...].astype(jnp.float32)                 # (TM, 2)
    w1 = w1_ref[...].astype(jnp.float32)               # (2, HIDDEN)

    # ---- layer 1 (2 -> 128): two broadcast FMAs on the VPU (K=2 underfills
    #      the MXU; two lane-broadcasts are cheap) ----
    h = z[:, 0:1] * w1[0:1, :] + z[:, 1:2] * w1[1:2, :] + b1_ref[...]
    h = jnp.maximum(h, 0.0)

    # ---- layers 2 & 3 (128 -> 128): MXU matmuls, f32 accumulation ----
    h = jnp.dot(h.astype(w2_ref.dtype), w2_ref[...],
                preferred_element_type=jnp.float32)
    h = jnp.maximum(h + b2_ref[...], 0.0)

    h = jnp.dot(h.astype(w3_ref.dtype), w3_ref[...],
                preferred_element_type=jnp.float32)
    h = jnp.maximum(h + b3_ref[...], 0.0)

    # ---- layer 4 (128 -> 2): MXU matmul against zero-padded (128,128) w4,
    #      then a static 2-lane slice.  Keeps the XLU idle. ----
    r = jnp.dot(h.astype(w4p_ref.dtype), w4p_ref[...],
                preferred_element_type=jnp.float32)    # (TM, HIDDEN)
    o_ref[...] = (r[:, 0:2] + b4_ref[...]).astype(o_ref.dtype)


def prepare_params(params, compute_dtype=jnp.float32):
    """One-time packing of G's parameters into kernel-ready layout (hoisted
    out of the hot path).  Expects weights stored as (in, out)."""
    w1, b1, w2, b2, w3, b3, w4, b4 = params
    w1 = jnp.asarray(w1, jnp.float32)
    w2 = jnp.asarray(w2, jnp.float32)
    w3 = jnp.asarray(w3, jnp.float32)
    w4 = jnp.asarray(w4, jnp.float32)
    assert w1.shape == (2, HIDDEN), w1.shape
    assert w2.shape == (HIDDEN, HIDDEN), w2.shape
    assert w3.shape == (HIDDEN, HIDDEN), w3.shape
    assert w4.shape == (HIDDEN, 2), w4.shape

    # Zero-pad w4 (128, 2) -> (128, 128); only cols 0..1 are nonzero, so the
    # MXU result's first two lanes equal h @ w4 exactly.
    w4_pad = jnp.zeros((HIDDEN, HIDDEN), jnp.float32).at[:, 0:2].set(w4)

    return (
        w1,                                                  # (2, 128) f32
        jnp.asarray(b1, jnp.float32).reshape(1, HIDDEN),
        w2.astype(compute_dtype),                            # (128, 128)
        jnp.asarray(b2, jnp.float32).reshape(1, HIDDEN),
        w3.astype(compute_dtype),                            # (128, 128)
        jnp.asarray(b3, jnp.float32).reshape(1, HIDDEN),
        w4_pad.astype(compute_dtype),                        # (128, 128)
        jnp.asarray(b4, jnp.float32).reshape(1, 2),
    )


def params_from_torch_layout(torch_params):
    """Convert PyTorch nn.Linear (out,in) weights to the (in,out) layout that
    prepare_params expects."""
    w1, b1, w2, b2, w3, b3, w4, b4 = torch_params
    return (jnp.asarray(w1).T, b1, jnp.asarray(w2).T, b2,
            jnp.asarray(w3).T, b3, jnp.asarray(w4).T, b4)


def _choose_tile(b8):
    """Pick the batch tile.  Single-TC chips (v5e/v6e): one tile as big as
    possible.  v7x: split into an even number of >=2 steps so the two
    TensorCores get balanced work via dimension_semantics=('parallel',)."""
    tm = min(MAX_TM, b8)
    if _MULTI_TC and b8 > 8:
        steps = max(2, _round_up(pl.cdiv(b8, tm), 2))   # even step count
        tm = max(8, _round_up(pl.cdiv(b8, steps), 8))
    b_pad = _round_up(b8, tm)
    return tm, b_pad


@jax.jit
def g_forward(z, prep):
    """z: (B, 2) float32. Returns (B, 2) float32, matching G.forward."""
    w1, b1, w2, b2, w3, b3, w4p, b4 = prep
    B, fin = z.shape
    assert fin == 2

    b8 = _round_up(B, 8)
    tm, b_pad = _choose_tile(b8)

    # Only pad when the batch doesn't already fit the tiling exactly.
    z_p = z if b_pad == B else jnp.pad(z, ((0, b_pad - B), (0, 0)))

    out = pl.pallas_call(
        mlp_kernel,
        out_shape=jax.ShapeDtypeStruct((b_pad, 2), jnp.float32),
        grid_spec=pltpu.PrefetchScalarGridSpec(
            num_scalar_prefetch=0,
            grid=(b_pad // tm,),
            in_specs=[
                pl.BlockSpec((tm, 2), lambda i: (i, 0)),   # z tile
                _invariant_spec((2, HIDDEN)),              # w1
                _invariant_spec((1, HIDDEN)),              # b1
                _invariant_spec((HIDDEN, HIDDEN)),         # w2
                _invariant_spec((1, HIDDEN)),              # b2
                _invariant_spec((HIDDEN, HIDDEN)),         # w3
                _invariant_spec((1, HIDDEN)),              # b3
                _invariant_spec((HIDDEN, HIDDEN)),         # w4 (zero-padded)
                _invariant_spec((1, 2)),                   # b4
            ],
            out_specs=pl.BlockSpec((tm, 2), lambda i: (i, 0)),
        ),
        compiler_params=pltpu.CompilerParams(
            dimension_semantics=("parallel",)),
    )(z_p, w1, b1, w2, b2, w3, b3, w4p, b4)

    return out[:B]


def init_params(key):
    """Deterministic init mimicking G.__init__: weight ~ N(0,1)*0.2,
    bias ~ N(0,1)*0.1.  Weights stored as (in, out)."""
    ks = jax.random.split(key, 8)
    dims = [(2, 128), (128, 128), (128, 128), (128, 2)]
    params = []
    for li, (din, dout) in enumerate(dims):
        w = jax.random.normal(ks[2 * li], (din, dout), jnp.float32) * 0.2
        b = jax.random.normal(ks[2 * li + 1], (dout,), jnp.float32) * 0.1
        params.extend([w, b])
    return tuple(params)


def reference_forward(z, params):
    (w1, b1, w2, b2, w3, b3, w4, b4) = params
    h = jnp.maximum(z @ w1 + b1, 0.0)
    h = jnp.maximum(h @ w2 + b2, 0.0)
    h = jnp.maximum(h @ w3 + b3, 0.0)
    return h @ w4 + b4


if __name__ == "__main__":
    key = jax.random.PRNGKey(0)
    k_param, k_z = jax.random.split(key)

    params = init_params(k_param)
    z = jax.random.normal(k_z, (8, 2), jnp.float32)   # batch=8, latent dim=2

    ref = reference_forward(z, params)

    # f32 path: exact PyTorch-module semantics.
    prep_f32 = prepare_params(params, jnp.float32)
    out = jax.block_until_ready(g_forward(z, prep_f32))
    assert out.shape == (8, 2), out.shape
    assert jnp.allclose(out, ref, atol=1e-5, rtol=1e-5), (out, ref)

    # bf16-weight path (v6e/v7x MXU throughput), f32 accumulation.
    prep_bf16 = prepare_params(params, jnp.bfloat16)
    out_bf16 = jax.block_until_ready(g_forward(z, prep_bf16))
    assert jnp.allclose(out_bf16, ref, atol=1e-1, rtol=1e-1), (out_bf16, ref)

    print("KERNEL_OK")
</pallas_src>

<mosaic_0001>
module attributes {stable_mosaic.version = 11 : i64} {
  func.func @mlp_kernel(%arg0: i32, %arg1: memref<8x2xf32, #tpu.memory_space<vmem>>, %arg2: memref<2x128xf32, #tpu.memory_space<vmem>>, %arg3: memref<1x128xf32, #tpu.memory_space<vmem>>, %arg4: memref<128x128xf32, #tpu.memory_space<vmem>>, %arg5: memref<1x128xf32, #tpu.memory_space<vmem>>, %arg6: memref<128x128xf32, #tpu.memory_space<vmem>>, %arg7: memref<1x128xf32, #tpu.memory_space<vmem>>, %arg8: memref<128x128xf32, #tpu.memory_space<vmem>>, %arg9: memref<1x2xf32, #tpu.memory_space<vmem>>, %arg10: memref<8x2xf32, #tpu.memory_space<vmem>>) attributes {dimension_semantics = [#tpu.dimension_semantics<parallel>], iteration_bounds = array<i64: 1>, scalar_prefetch = 0 : i64, scratch_operands = 0 : i64, tpu.core_type = #tpu.core_type<tc>, window_params = [{transform_indices = @transform_0, window_bounds = array<i64: 8, 2>}, {pipeline_mode = #tpu.pipeline_mode<synchronous>, transform_indices = @transform_1, window_bounds = array<i64: 2, 128>}, {pipeline_mode = #tpu.pipeline_mode<synchronous>, transform_indices = @transform_2, window_bounds = array<i64: 1, 128>}, {pipeline_mode = #tpu.pipeline_mode<synchronous>, transform_indices = @transform_3, window_bounds = array<i64: 128, 128>}, {pipeline_mode = #tpu.pipeline_mode<synchronous>, transform_indices = @transform_4, window_bounds = array<i64: 1, 128>}, {pipeline_mode = #tpu.pipeline_mode<synchronous>, transform_indices = @transform_5, window_bounds = array<i64: 128, 128>}, {pipeline_mode = #tpu.pipeline_mode<synchronous>, transform_indices = @transform_6, window_bounds = array<i64: 1, 128>}, {pipeline_mode = #tpu.pipeline_mode<synchronous>, transform_indices = @transform_7, window_bounds = array<i64: 128, 128>}, {pipeline_mode = #tpu.pipeline_mode<synchronous>, transform_indices = @transform_8, window_bounds = array<i64: 1, 2>}, {transform_indices = @transform_9, window_bounds = array<i64: 8, 2>}]} {
    %c0 = arith.constant 0 : index
    %c0_0 = arith.constant 0 : index
    %0 = vector.load %arg1[%c0, %c0_0] : memref<8x2xf32, #tpu.memory_space<vmem>>, vector<8x2xf32>
    %c0_1 = arith.constant 0 : index
    %c0_2 = arith.constant 0 : index
    %1 = vector.load %arg2[%c0_1, %c0_2] : memref<2x128xf32, #tpu.memory_space<vmem>>, vector<2x128xf32>
    %2 = vector.extract_strided_slice %0 {offsets = [0, 0], sizes = [8, 1], strides = [1, 1]} : vector<8x2xf32> to vector<8x1xf32>
    %3 = vector.extract_strided_slice %1 {offsets = [0, 0], sizes = [1, 128], strides = [1, 1]} : vector<2x128xf32> to vector<1x128xf32>
    %4 = vector.broadcast %2 : vector<8x1xf32> to vector<8x128xf32>
    %5 = vector.broadcast %3 : vector<1x128xf32> to vector<8x128xf32>
    %6 = arith.mulf %4, %5 : vector<8x128xf32>
    %7 = vector.extract_strided_slice %0 {offsets = [0, 1], sizes = [8, 1], strides = [1, 1]} : vector<8x2xf32> to vector<8x1xf32>
    %8 = vector.extract_strided_slice %1 {offsets = [1, 0], sizes = [1, 128], strides = [1, 1]} : vector<2x128xf32> to vector<1x128xf32>
    %9 = vector.broadcast %7 : vector<8x1xf32> to vector<8x128xf32>
    %10 = vector.broadcast %8 : vector<1x128xf32> to vector<8x128xf32>
    %11 = arith.mulf %9, %10 : vector<8x128xf32>
    %12 = arith.addf %6, %11 : vector<8x128xf32>
    %c0_3 = arith.constant 0 : index
    %c0_4 = arith.constant 0 : index
    %13 = vector.load %arg3[%c0_3, %c0_4] : memref<1x128xf32, #tpu.memory_space<vmem>>, vector<1x128xf32>
    %14 = vector.broadcast %13 : vector<1x128xf32> to vector<8x128xf32>
    %15 = arith.addf %12, %14 : vector<8x128xf32>
    %cst = arith.constant 0.000000e+00 : f32
    %16 = vector.broadcast %cst : f32 to vector<8x128xf32>
    %17 = arith.maximumf %15, %16 : vector<8x128xf32>
    %c0_5 = arith.constant 0 : index
    %c0_6 = arith.constant 0 : index
    %18 = vector.load %arg4[%c0_5, %c0_6] : memref<128x128xf32, #tpu.memory_space<vmem>>, vector<128x128xf32>
    %cst_7 = arith.constant dense<0.000000e+00> : vector<8x128xf32>
    %19 = tpu.matmul %17, %18, %cst_7 {dimension_numbers = #tpu.dot_dimension_numbers<[1], [0], [0], [1], [0, 0, 1, 1], [], []>} : vector<8x128xf32>, vector<128x128xf32>, vector<8x128xf32> -> vector<8x128xf32>
    %c0_8 = arith.constant 0 : index
    %c0_9 = arith.constant 0 : index
    %20 = vector.load %arg5[%c0_8, %c0_9] : memref<1x128xf32, #tpu.memory_space<vmem>>, vector<1x128xf32>
    %21 = vector.broadcast %20 : vector<1x128xf32> to vector<8x128xf32>
    %22 = arith.addf %19, %21 : vector<8x128xf32>
    %cst_10 = arith.constant 0.000000e+00 : f32
    %23 = vector.broadcast %cst_10 : f32 to vector<8x128xf32>
    %24 = arith.maximumf %22, %23 : vector<8x128xf32>
    %c0_11 = arith.constant 0 : index
    %c0_12 = arith.constant 0 : index
    %25 = vector.load %arg6[%c0_11, %c0_12] : memref<128x128xf32, #tpu.memory_space<vmem>>, vector<128x128xf32>
    %cst_13 = arith.constant dense<0.000000e+00> : vector<8x128xf32>
    %26 = tpu.matmul %24, %25, %cst_13 {dimension_numbers = #tpu.dot_dimension_numbers<[1], [0], [0], [1], [0, 0, 1, 1], [], []>} : vector<8x128xf32>, vector<128x128xf32>, vector<8x128xf32> -> vector<8x128xf32>
    %c0_14 = arith.constant 0 : index
    %c0_15 = arith.constant 0 : index
    %27 = vector.load %arg7[%c0_14, %c0_15] : memref<1x128xf32, #tpu.memory_space<vmem>>, vector<1x128xf32>
    %28 = vector.broadcast %27 : vector<1x128xf32> to vector<8x128xf32>
    %29 = arith.addf %26, %28 : vector<8x128xf32>
    %cst_16 = arith.constant 0.000000e+00 : f32
    %30 = vector.broadcast %cst_16 : f32 to vector<8x128xf32>
    %31 = arith.maximumf %29, %30 : vector<8x128xf32>
    %c0_17 = arith.constant 0 : index
    %c0_18 = arith.constant 0 : index
    %32 = vector.load %arg8[%c0_17, %c0_18] : memref<128x128xf32, #tpu.memory_space<vmem>>, vector<128x128xf32>
    %cst_19 = arith.constant dense<0.000000e+00> : vector<8x128xf32>
    %33 = tpu.matmul %31, %32, %cst_19 {dimension_numbers = #tpu.dot_dimension_numbers<[1], [0], [0], [1], [0, 0, 1, 1], [], []>} : vector<8x128xf32>, vector<128x128xf32>, vector<8x128xf32> -> vector<8x128xf32>
    %34 = vector.extract_strided_slice %33 {offsets = [0, 0], sizes = [8, 2], strides = [1, 1]} : vector<8x128xf32> to vector<8x2xf32>
    %c0_20 = arith.constant 0 : index
    %c0_21 = arith.constant 0 : index
    %35 = vector.load %arg9[%c0_20, %c0_21] : memref<1x2xf32, #tpu.memory_space<vmem>>, vector<1x2xf32>
    %36 = vector.broadcast %35 : vector<1x2xf32> to vector<8x2xf32>
    %37 = arith.addf %34, %36 : vector<8x2xf32>
    %c0_22 = arith.constant 0 : index
    %c0_23 = arith.constant 0 : index
    %38 = vector.load %arg10[%c0_22, %c0_23] : memref<8x2xf32, #tpu.memory_space<vmem>>, vector<8x2xf32>
    tpu.vector_store %arg10[%c0_22, %c0_23], %37 {strides = array<i32>} : memref<8x2xf32, #tpu.memory_space<vmem>>, vector<8x2xf32>,
    return
  }
  func.func @transform_0(%arg0: i32) -> (i32, i32) {
    %c0_i32 = arith.constant 0 : i32
    %c0_i32_0 = arith.constant 0 : i32
    return %arg0, %c0_i32 : i32, i32
  }
  func.func @transform_1(%arg0: i32) -> (i32, i32) {
    %c0_i32 = arith.constant 0 : i32
    %c0_i32_0 = arith.constant 0 : i32
    %c0_i32_1 = arith.constant 0 : i32
    return %c0_i32, %c0_i32_0 : i32, i32
  }
  func.func @transform_2(%arg0: i32) -> (i32, i32) {
    %c0_i32 = arith.constant 0 : i32
    %c0_i32_0 = arith.constant 0 : i32
    %c0_i32_1 = arith.constant 0 : i32
    return %c0_i32, %c0_i32_0 : i32, i32
  }
  func.func @transform_3(%arg0: i32) -> (i32, i32) {
    %c0_i32 = arith.constant 0 : i32
    %c0_i32_0 = arith.constant 0 : i32
    %c0_i32_1 = arith.constant 0 : i32
    return %c0_i32, %c0_i32_0 : i32, i32
  }
  func.func @transform_4(%arg0: i32) -> (i32, i32) {
    %c0_i32 = arith.constant 0 : i32
    %c0_i32_0 = arith.constant 0 : i32
    %c0_i32_1 = arith.constant 0 : i32
    return %c0_i32, %c0_i32_0 : i32, i32
  }
  func.func @transform_5(%arg0: i32) -> (i32, i32) {
    %c0_i32 = arith.constant 0 : i32
    %c0_i32_0 = arith.constant 0 : i32
    %c0_i32_1 = arith.constant 0 : i32
    return %c0_i32, %c0_i32_0 : i32, i32
  }
  func.func @transform_6(%arg0: i32) -> (i32, i32) {
    %c0_i32 = arith.constant 0 : i32
    %c0_i32_0 = arith.constant 0 : i32
    %c0_i32_1 = arith.constant 0 : i32
    return %c0_i32, %c0_i32_0 : i32, i32
  }
  func.func @transform_7(%arg0: i32) -> (i32, i32) {
    %c0_i32 = arith.constant 0 : i32
    %c0_i32_0 = arith.constant 0 : i32
    %c0_i32_1 = arith.constant 0 : i32
    return %c0_i32, %c0_i32_0 : i32, i32
  }
  func.func @transform_8(%arg0: i32) -> (i32, i32) {
    %c0_i32 = arith.constant 0 : i32
    %c0_i32_0 = arith.constant 0 : i32
    %c0_i32_1 = arith.constant 0 : i32
    return %c0_i32, %c0_i32_0 : i32, i32
  }
  func.func @transform_9(%arg0: i32) -> (i32, i32) {
    %c0_i32 = arith.constant 0 : i32
    %c0_i32_0 = arith.constant 0 : i32
    return %arg0, %c0_i32 : i32, i32
  }
}

</mosaic_0001>

<llo_original>
// kernel: g_forward.1
$region0: #{g_forward.1}
  #allocation0 [shape = 'u32[]', space=smem, size = 0x4, offset = 0x4, fixed_abs, tag = 'smem constant byte address 0x4 - core index']
  #allocation1 [shape = 'u32[144,128]{1,0:T(1,128)}', space=vmem, size = 0x12000, scoped, tag = 'internal scratch']
  %s0 = inlined_call_operand.vmem [shape: f32[8,2], index: 0, kind: input, shape index: {}]
  %s1 = inlined_call_operand.vmem [shape: f32[2,128], index: 1, kind: input, shape index: {}]
  %s2 = inlined_call_operand.vmem [shape: f32[1,128], index: 2, kind: input, shape index: {}]
  %s3 = inlined_call_operand.hbm [shape: f32[128,128], index: 3, kind: input, shape index: {}]
  %s4 = inlined_call_operand.vmem [shape: f32[1,128], index: 4, kind: input, shape index: {}]
  %s5 = inlined_call_operand.hbm [shape: f32[128,128], index: 5, kind: input, shape index: {}]
  %s6 = inlined_call_operand.vmem [shape: f32[1,128], index: 6, kind: input, shape index: {}]
  %s7 = inlined_call_operand.hbm [shape: f32[128,128], index: 7, kind: input, shape index: {}]
  %s8 = inlined_call_operand.vmem [shape: f32[1,2], index: 8, kind: input, shape index: {}]
  %s9 = inlined_call_operand.vmem [shape: f32[8,2], index: 9, kind: output, shape index: {}]
  %s10 = sld [smem:[#allocation0]]
  $region58: #{g_forward.1} parent=0
    _
  %s12 = ssub.s32 1, %s10
  %s13 = scalar_select 0, %s12, %s10
  $region1: #{g_forward.1} parent=0
    #allocation2 [shape = 'u8[65536]{0}', space=vmem, size = 0x10000, scoped, tag = 'input window, operand 3, single buffered']
    #allocation3 [shape = 's32[1]{0}', space=sflag, size = 0x4, scoped, tag = 'scoped memory for g_forward.1']
    #allocation4 [shape = 'u8[65536]{0}', space=vmem, size = 0x10000, scoped, tag = 'input window, operand 5, single buffered']
    #allocation5 [shape = 's32[1]{0}', space=sflag, size = 0x4, scoped, tag = 'scoped memory for g_forward.1']
    #allocation6 [shape = 'u8[65536]{0}', space=vmem, size = 0x10000, scoped, tag = 'input window, operand 7, single buffered']
    %14 = vsyncpa [#allocation3], 0
    %15 = vsyncpa [#allocation5], 0
    // Predicated region
    $region2: #{g_forward.1} parent=1 // pred_check
      _
    $region3: #{g_forward.1} parent=1 // pred_check_branch
      %17 = sbr.rel (0) target = $region5
    $region4: #{g_forward.1} parent=1 // pred_region
      _
    $region5: #{g_forward.1} parent=1 // pred_fallthru
      _
    // Predicated region
    $region6: #{g_forward.1} parent=1 // pred_check
      _
    $region7: #{g_forward.1} parent=1 // pred_check_branch
      %19 = sbr.rel (0) target = $region9
    $region8: #{g_forward.1} parent=1 // pred_region
      _
    $region9: #{g_forward.1} parent=1 // pred_fallthru
      _
    // Predicated region
    $region10: #{g_forward.1} parent=1 // pred_check
      _
    $region11: #{g_forward.1} parent=1 // pred_check_branch
      %21 = sbr.rel (0) target = $region13
    $region12: #{g_forward.1} parent=1 // pred_region
      _
    $region13: #{g_forward.1} parent=1 // pred_fallthru
      _
    // Predicated region
    $region14: #{g_forward.1} parent=1 // pred_check
      _
    $region15: #{g_forward.1} parent=1 // pred_check_branch
      %23 = sbr.rel (0) target = $region17
    $region16: #{g_forward.1} parent=1 // pred_region
      %s25 = ssub.s32 2048, 2048
      %26 = vsyncadd [#allocation3], %s25
      %s27 = sshll.u32 [#allocation2], 4
      %s28 = int_to_ptr.vmem [resolvable:$true] %s27
      %33 = dma.hbm_to_vmem [thread:$0]  %s3, 2048, %s28, [#allocation3], 128, 128, 8
    $region17: #{g_forward.1} parent=1 // pred_fallthru
      _
    // Predicated region
    $region18: #{g_forward.1} parent=1 // pred_check
      _
    $region19: #{g_forward.1} parent=1 // pred_check_branch
      %35 = sbr.rel (0) target = $region21
    $region20: #{g_forward.1} parent=1 // pred_region
      _
    $region21: #{g_forward.1} parent=1 // pred_fallthru
      _
    // Predicated region
    $region22: #{g_forward.1} parent=1 // pred_check
      _
    $region23: #{g_forward.1} parent=1 // pred_check_branch
      %37 = sbr.rel (0) target = $region25
    $region24: #{g_forward.1} parent=1 // pred_region
      %s39 = ssub.s32 2048, 2048
      %40 = vsyncadd [#allocation5], %s39
      %s41 = sshll.u32 [#allocation4], 4
      %s42 = int_to_ptr.vmem [resolvable:$true] %s41
      %47 = dma.hbm_to_vmem [thread:$0]  %s5, 2048, %s42, [#allocation5], 128, 128, 8
    $region25: #{g_forward.1} parent=1 // pred_fallthru
      _
    // Predicated region
    $region26: #{g_forward.1} parent=1 // pred_check
      _
    $region27: #{g_forward.1} parent=1 // pred_check_branch
      %49 = sbr.rel (0) target = $region29
    $region28: #{g_forward.1} parent=1 // pred_region
      _
    $region29: #{g_forward.1} parent=1 // pred_fallthru
      _
    // Predicated region
    $region30: #{g_forward.1} parent=1 // pred_check
      _
    $region31: #{g_forward.1} parent=1 // pred_check_branch
      %51 = sbr.rel (0) target = $region33
    $region32: #{g_forward.1} parent=1 // pred_region
      %s53 = ssub.s32 2048, 2048
      %54 = vsyncadd [#allocation5], %s53
      %s55 = sshll.u32 [#allocation6], 4
      %s56 = int_to_ptr.vmem [resolvable:$true] %s55
      %61 = dma.hbm_to_vmem [thread:$0]  %s7, 2048, %s56, [#allocation5], 128, 128, 8
    $region33: #{g_forward.1} parent=1 // pred_fallthru
      _
    // Predicated region
    $region34: #{g_forward.1} parent=1 // pred_check
      _
    $region35: #{g_forward.1} parent=1 // pred_check_branch
      %63 = sbr.rel (0) target = $region37
    $region36: #{g_forward.1} parent=1 // pred_region
      _
    $region37: #{g_forward.1} parent=1 // pred_fallthru
      _
    // Predicated region
    $region38: #{g_forward.1} parent=1 // pred_check
      _
    $region39: #{g_forward.1} parent=1 // pred_check_branch
      %65 = sbr.rel (0) target = $region41
    $region40: #{g_forward.1} parent=1 // pred_region
      %66 = dma.done [#allocation3], 2048
    $region41: #{g_forward.1} parent=1 // pred_fallthru
      _
    // Predicated region
    $region42: #{g_forward.1} parent=1 // pred_check
      _
    $region43: #{g_forward.1} parent=1 // pred_check_branch
      %68 = sbr.rel (0) target = $region45
    $region44: #{g_forward.1} parent=1 // pred_region
      %69 = dma.done [#allocation5], 2048
    $region45: #{g_forward.1} parent=1 // pred_fallthru
      _
    // Predicated region
    $region46: #{g_forward.1} parent=1 // pred_check
      _
    $region47: #{g_forward.1} parent=1 // pred_check_branch
      %71 = sbr.rel (0) target = $region49
    $region48: #{g_forward.1} parent=1 // pred_region
      %72 = dma.done [#allocation5], 2048
    $region49: #{g_forward.1} parent=1 // pred_fallthru
      _
    %v73 = vld [vmem:[%s0] sm:$0xff]
    %v74 = vld [vmem:[%s1] sm:$0x3]
    %76 = vset.pattern.permute.xlu0 0
    %77 = vperm.xlu0 %76, %v73
    %v78 = vpop.permute.xlu0 %77
    %v80 = vlaneseq
    %v81 = vshrl.u32 %v80, 7
    %v82 = vsub.s32 0, %v81
    %v83 = vrot.slane %v74, %v82
    %v84 = vmul.f32 %v78, %v83
    %85 = vset.pattern.permute.xlu0 1
    %86 = vperm.xlu0 %85, %v73
    %v87 = vpop.permute.xlu0 %86
    %v89 = vlaneseq
    %v90 = vshrl.u32 %v89, 7
    %v91 = vsub.s32 1, %v90
    %v92 = vrot.slane %v74, %v91
    %v93 = vmul.f32 %v87, %v92
    %v94 = vadd.f32 %v84, %v93
    %v95 = vld [vmem:[%s2] sm:$0x1]
    %v97 = vlaneseq
    %v98 = vshrl.u32 %v97, 7
    %v99 = vsub.s32 0, %v98
    %v100 = vrot.slane %v95, %v99
    %v102 = vadd.f32 %v94, %v100
    %v103 = vmax.f32 %v102, 0.0
    %v104 = vld [vmem:[#allocation2] sm:$0xff]
    %v105 = vld [vmem:[#allocation2 + $0x8] sm:$0xff]
    %v106 = vld [vmem:[#allocation2 + $0x10] sm:$0xff]
    %v107 = vld [vmem:[#allocation2 + $0x18] sm:$0xff]
    %v108 = vld [vmem:[#allocation2 + $0x20] sm:$0xff]
    %v109 = vld [vmem:[#allocation2 + $0x28] sm:$0xff]
    %v110 = vld [vmem:[#allocation2 + $0x30] sm:$0xff]
    %v111 = vld [vmem:[#allocation2 + $0x38] sm:$0xff]
    %v112 = vld [vmem:[#allocation2 + $0x40] sm:$0xff]
    %v113 = vld [vmem:[#allocation2 + $0x48] sm:$0xff]
    %v114 = vld [vmem:[#allocation2 + $0x50] sm:$0xff]
    %v115 = vld [vmem:[#allocation2 + $0x58] sm:$0xff]
    %v116 = vld [vmem:[#allocation2 + $0x60] sm:$0xff]
    %v117 = vld [vmem:[#allocation2 + $0x68] sm:$0xff]
    %v118 = vld [vmem:[#allocation2 + $0x70] sm:$0xff]
    %v119 = vld [vmem:[#allocation2 + $0x78] sm:$0xff]
    %v120 = vld [vmem:[%s4] sm:$0x1]
    %v122 = vlaneseq
    %v123 = vshrl.u32 %v122, 7
    %v124 = vsub.s32 0, %v123
    %v125 = vrot.slane %v120, %v124
    %127 = vmatprep.subr.mxu0 0.0
    %128 = vmatpush1.msra.mxu0 %v104
    %129 = vmatprep.subr.mxu0 0.0
    %130 = vmatpush1.msra.mxu0 %v105
    %131 = vmatprep.subr.mxu0 0.0
    %132 = vmatpush1.msra.mxu0 %v106
    %133 = vmatprep.subr.mxu0 0.0
    %134 = vmatpush1.msra.mxu0 %v107
    %135 = vmatprep.subr.mxu0 0.0
    %136 = vmatpush1.msra.mxu0 %v108
    %137 = vmatprep.subr.mxu0 0.0
    %138 = vmatpush1.msra.mxu0 %v109
    %139 = vmatprep.subr.mxu0 0.0
    %140 = vmatpush1.msra.mxu0 %v110
    %141 = vmatprep.subr.mxu0 0.0
    %142 = vmatpush1.msra.mxu0 %v111
    %143 = vmatprep.subr.mxu0 0.0
    %144 = vmatpush1.msra.mxu0 %v112
    %145 = vmatprep.subr.mxu0 0.0
    %146 = vmatpush1.msra.mxu0 %v113
    %147 = vmatprep.subr.mxu0 0.0
    %148 = vmatpush1.msra.mxu0 %v114
    %149 = vmatprep.subr.mxu0 0.0
    %150 = vmatpush1.msra.mxu0 %v115
    %151 = vmatprep.subr.mxu0 0.0
    %152 = vmatpush1.msra.mxu0 %v116
    %153 = vmatprep.subr.mxu0 0.0
    %154 = vmatpush1.msra.mxu0 %v117
    %155 = vmatprep.subr.mxu0 0.0
    %156 = vmatpush1.msra.mxu0 %v118
    %157 = vmatprep.subr.mxu0 0.0
    %158 = vmatpush1.msra.mxu0 %v119
    %159 = vmatprep.subr.mxu0 0.0
    %160 = vmatpush1.msra.mxu0 0.0
    %161 = vmatprep.subr.mxu0 0.0
    %162 = vmatpush1.msra.mxu0 0.0
    %163 = vmatprep.subr.mxu0 0.0
    %164 = vmatpush1.msra.mxu0 0.0
    %165 = vmatprep.subr.mxu0 0.0
    %166 = vmatpush1.msra.mxu0 0.0
    %167 = vmatprep.subr.mxu0 0.0
    %168 = vmatpush1.msra.mxu0 0.0
    %169 = vmatprep.subr.mxu0 0.0
    %170 = vmatpush1.msra.mxu0 0.0
    %171 = vmatprep.subr.mxu0 0.0
    %172 = vmatpush1.msra.mxu0 0.0
    %173 = vmatprep.subr.mxu0 0.0
    %174 = vmatpush1.msra.mxu0 0.0
    %175 = vmatprep.subr.mxu0 0.0
    %176 = vmatpush1.msra.mxu0 0.0
    %177 = vmatprep.subr.mxu0 0.0
    %178 = vmatpush1.msra.mxu0 0.0
    %179 = vmatprep.subr.mxu0 0.0
    %180 = vmatpush1.msra.mxu0 0.0
    %181 = vmatprep.subr.mxu0 0.0
    %182 = vmatpush1.msra.mxu0 0.0
    %183 = vmatprep.subr.mxu0 0.0
    %184 = vmatpush1.msra.mxu0 0.0
    %185 = vmatprep.subr.mxu0 0.0
    %186 = vmatpush1.msra.mxu0 0.0
    %187 = vmatprep.subr.mxu0 0.0
    %188 = vmatpush1.msra.mxu0 0.0
    %189 = vmatprep.subr.mxu0 0.0
    %190 = vmatpush1.msra.mxu0 0.0
    %191 = vmatprep.mubr.f32.mxu0 0.0
    %192 = vmatmul.mubr.f32.gmra.mrb[0].mxu0 %v103
    %v193 = vpop.f32.mrb[0].mxu0
    %v194 = vadd.f32 %v125, %v193
    %v195 = vpop.f32.mrb[0].mxu0
    %196 = vdwg.mxu0
    %v197 = vmax.f32 %v194, 0.0
    %v198 = vld [vmem:[#allocation4] sm:$0xff]
    %v199 = vld [vmem:[#allocation4 + $0x8] sm:$0xff]
    %v200 = vld [vmem:[#allocation4 + $0x10] sm:$0xff]
    %v201 = vld [vmem:[#allocation4 + $0x18] sm:$0xff]
    %v202 = vld [vmem:[#allocation4 + $0x20] sm:$0xff]
    %v203 = vld [vmem:[#allocation4 + $0x28] sm:$0xff]
    %v204 = vld [vmem:[#allocation4 + $0x30] sm:$0xff]
    %v205 = vld [vmem:[#allocation4 + $0x38] sm:$0xff]
    %v206 = vld [vmem:[#allocation4 + $0x40] sm:$0xff]
    %v207 = vld [vmem:[#allocation4 + $0x48] sm:$0xff]
    %v208 = vld [vmem:[#allocation4 + $0x50] sm:$0xff]
    %v209 = vld [vmem:[#allocation4 + $0x58] sm:$0xff]
    %v210 = vld [vmem:[#allocation4 + $0x60] sm:$0xff]
    %v211 = vld [vmem:[#allocation4 + $0x68] sm:$0xff]
    %v212 = vld [vmem:[#allocation4 + $0x70] sm:$0xff]
    %v213 = vld [vmem:[#allocation4 + $0x78] sm:$0xff]
    %v214 = vld [vmem:[%s6] sm:$0x1]
    %v216 = vlaneseq
    %v217 = vshrl.u32 %v216, 7
    %v218 = vsub.s32 0, %v217
    %v219 = vrot.slane %v214, %v218
    %221 = vmatprep.subr.mxu0 0.0
    %222 = vmatpush1.msra.mxu0 %v198
    %223 = vmatprep.subr.mxu0 0.0
    %224 = vmatpush1.msra.mxu0 %v199
    %225 = vmatprep.subr.mxu0 0.0
    %226 = vmatpush1.msra.mxu0 %v200
    %227 = vmatprep.subr.mxu0 0.0
    %228 = vmatpush1.msra.mxu0 %v201
    %229 = vmatprep.subr.mxu0 0.0
    %230 = vmatpush1.msra.mxu0 %v202
    %231 = vmatprep.subr.mxu0 0.0
    %232 = vmatpush1.msra.mxu0 %v203
    %233 = vmatprep.subr.mxu0 0.0
    %234 = vmatpush1.msra.mxu0 %v204
    %235 = vmatprep.subr.mxu0 0.0
    %236 = vmatpush1.msra.mxu0 %v205
    %237 = vmatprep.subr.mxu0 0.0
    %238 = vmatpush1.msra.mxu0 %v206
    %239 = vmatprep.subr.mxu0 0.0
    %240 = vmatpush1.msra.mxu0 %v207
    %241 = vmatprep.subr.mxu0 0.0
    %242 = vmatpush1.msra.mxu0 %v208
    %243 = vmatprep.subr.mxu0 0.0
    %244 = vmatpush1.msra.mxu0 %v209
    %245 = vmatprep.subr.mxu0 0.0
    %246 = vmatpush1.msra.mxu0 %v210
    %247 = vmatprep.subr.mxu0 0.0
    %248 = vmatpush1.msra.mxu0 %v211
    %249 = vmatprep.subr.mxu0 0.0
    %250 = vmatpush1.msra.mxu0 %v212
    %251 = vmatprep.subr.mxu0 0.0
    %252 = vmatpush1.msra.mxu0 %v213
    %253 = vmatprep.subr.mxu0 0.0
    %254 = vmatpush1.msra.mxu0 0.0
    %255 = vmatprep.subr.mxu0 0.0
    %256 = vmatpush1.msra.mxu0 0.0
    %257 = vmatprep.subr.mxu0 0.0
    %258 = vmatpush1.msra.mxu0 0.0
    %259 = vmatprep.subr.mxu0 0.0
    %260 = vmatpush1.msra.mxu0 0.0
    %261 = vmatprep.subr.mxu0 0.0
    %262 = vmatpush1.msra.mxu0 0.0
    %263 = vmatprep.subr.mxu0 0.0
    %264 = vmatpush1.msra.mxu0 0.0
    %265 = vmatprep.subr.mxu0 0.0
    %266 = vmatpush1.msra.mxu0 0.0
    %267 = vmatprep.subr.mxu0 0.0
    %268 = vmatpush1.msra.mxu0 0.0
    %269 = vmatprep.subr.mxu0 0.0
    %270 = vmatpush1.msra.mxu0 0.0
    %271 = vmatprep.subr.mxu0 0.0
    %272 = vmatpush1.msra.mxu0 0.0
    %273 = vmatprep.subr.mxu0 0.0
    %274 = vmatpush1.msra.mxu0 0.0
    %275 = vmatprep.subr.mxu0 0.0
    %276 = vmatpush1.msra.mxu0 0.0
    %277 = vmatprep.subr.mxu0 0.0
    %278 = vmatpush1.msra.mxu0 0.0
    %279 = vmatprep.subr.mxu0 0.0
    %280 = vmatpush1.msra.mxu0 0.0
    %281 = vmatprep.subr.mxu0 0.0
    %282 = vmatpush1.msra.mxu0 0.0
    %283 = vmatprep.subr.mxu0 0.0
    %284 = vmatpush1.msra.mxu0 0.0
    %285 = vmatprep.mubr.f32.mxu0 0.0
    %286 = vmatmul.mubr.f32.gmra.mrb[0].mxu0 %v197
    %v287 = vpop.f32.mrb[0].mxu0
    %v288 = vadd.f32 %v219, %v287
    %v289 = vpop.f32.mrb[0].mxu0
    %290 = vdwg.mxu0
    %v291 = vmax.f32 %v288, 0.0
    %v292 = vld [vmem:[#allocation6] sm:$0xff]
    %v293 = vld [vmem:[#allocation6 + $0x8] sm:$0xff]
    %v294 = vld [vmem:[#allocation6 + $0x10] sm:$0xff]
    %v295 = vld [vmem:[#allocation6 + $0x18] sm:$0xff]
    %v296 = vld [vmem:[#allocation6 + $0x20] sm:$0xff]
    %v297 = vld [vmem:[#allocation6 + $0x28] sm:$0xff]
    %v298 = vld [vmem:[#allocation6 + $0x30] sm:$0xff]
    %v299 = vld [vmem:[#allocation6 + $0x38] sm:$0xff]
    %v300 = vld [vmem:[#allocation6 + $0x40] sm:$0xff]
    %v301 = vld [vmem:[#allocation6 + $0x48] sm:$0xff]
    %v302 = vld [vmem:[#allocation6 + $0x50] sm:$0xff]
    %v303 = vld [vmem:[#allocation6 + $0x58] sm:$0xff]
    %v304 = vld [vmem:[#allocation6 + $0x60] sm:$0xff]
    %v305 = vld [vmem:[#allocation6 + $0x68] sm:$0xff]
    %v306 = vld [vmem:[#allocation6 + $0x70] sm:$0xff]
    %v307 = vld [vmem:[#allocation6 + $0x78] sm:$0xff]
    %308 = vmatprep.subr.mxu0 0.0
    %309 = vmatpush1.msra.mxu0 %v292
    %310 = vmatprep.subr.mxu0 0.0
    %311 = vmatpush1.msra.mxu0 %v293
    %312 = vmatprep.subr.mxu0 0.0
    %313 = vmatpush1.msra.mxu0 %v294
    %314 = vmatprep.subr.mxu0 0.0
    %315 = vmatpush1.msra.mxu0 %v295
    %316 = vmatprep.subr.mxu0 0.0
    %317 = vmatpush1.msra.mxu0 %v296
    %318 = vmatprep.subr.mxu0 0.0
    %319 = vmatpush1.msra.mxu0 %v297
    %320 = vmatprep.subr.mxu0 0.0
    %321 = vmatpush1.msra.mxu0 %v298
    %322 = vmatprep.subr.mxu0 0.0
    %323 = vmatpush1.msra.mxu0 %v299
    %324 = vmatprep.subr.mxu0 0.0
    %325 = vmatpush1.msra.mxu0 %v300
    %326 = vmatprep.subr.mxu0 0.0
    %327 = vmatpush1.msra.mxu0 %v301
    %328 = vmatprep.subr.mxu0 0.0
    %329 = vmatpush1.msra.mxu0 %v302
    %330 = vmatprep.subr.mxu0 0.0
    %331 = vmatpush1.msra.mxu0 %v303
    %332 = vmatprep.subr.mxu0 0.0
    %333 = vmatpush1.msra.mxu0 %v304
    %334 = vmatprep.subr.mxu0 0.0
    %335 = vmatpush1.msra.mxu0 %v305
    %336 = vmatprep.subr.mxu0 0.0
    %337 = vmatpush1.msra.mxu0 %v306
    %338 = vmatprep.subr.mxu0 0.0
    %339 = vmatpush1.msra.mxu0 %v307
    %340 = vmatprep.subr.mxu0 0.0
    %341 = vmatpush1.msra.mxu0 0.0
    %342 = vmatprep.subr.mxu0 0.0
    %343 = vmatpush1.msra.mxu0 0.0
    %344 = vmatprep.subr.mxu0 0.0
    %345 = vmatpush1.msra.mxu0 0.0
    %346 = vmatprep.subr.mxu0 0.0
    %347 = vmatpush1.msra.mxu0 0.0
    %348 = vmatprep.subr.mxu0 0.0
    %349 = vmatpush1.msra.mxu0 0.0
    %350 = vmatprep.subr.mxu0 0.0
    %351 = vmatpush1.msra.mxu0 0.0
    %352 = vmatprep.subr.mxu0 0.0
    %353 = vmatpush1.msra.mxu0 0.0
    %354 = vmatprep.subr.mxu0 0.0
    %355 = vmatpush1.msra.mxu0 0.0
    %356 = vmatprep.subr.mxu0 0.0
    %357 = vmatpush1.msra.mxu0 0.0
    %358 = vmatprep.subr.mxu0 0.0
    %359 = vmatpush1.msra.mxu0 0.0
    %360 = vmatprep.subr.mxu0 0.0
    %361 = vmatpush1.msra.mxu0 0.0
    %362 = vmatprep.subr.mxu0 0.0
    %363 = vmatpush1.msra.mxu0 0.0
    %364 = vmatprep.subr.mxu0 0.0
    %365 = vmatpush1.msra.mxu0 0.0
    %366 = vmatprep.subr.mxu0 0.0
    %367 = vmatpush1.msra.mxu0 0.0
    %368 = vmatprep.subr.mxu0 0.0
    %369 = vmatpush1.msra.mxu0 0.0
    %370 = vmatprep.subr.mxu0 0.0
    %371 = vmatpush1.msra.mxu0 0.0
    %372 = vmatprep.mubr.f32.mxu0 0.0
    %373 = vmatmul.mubr.f32.gmra.mrb[0].mxu0 %v291
    %v374 = vpop.f32.mrb[0].mxu0
    %v375 = vadd.f32 0.0, %v374
    %v376 = vpop.f32.mrb[0].mxu0
    %377 = vdwg.mxu0
    %v378 = vld [vmem:[%s8] sm:$0x1]
    %v380 = vlaneseq
    %v381 = vshrl.u32 %v380, 7
    %v382 = vsub.s32 0, %v381
    %v383 = vrot.slane %v378, %v382
    %v385 = vadd.f32 %v375, %v383
    %vm386 = vcmask 15360
    %387 = vst.msk [vmem:[%s9] sm:$0xff] %vm386, %v385
    // Predicated region
    $region50: #{g_forward.1} parent=1 // pred_check
      _
    $region51: #{g_forward.1} parent=1 // pred_check_branch
      %389 = sbr.rel (0) target = $region53
    $region52: #{g_forward.1} parent=1 // pred_region
      _
    $region53: #{g_forward.1} parent=1 // pred_fallthru
      _
    // Predicated region
    $region54: #{g_forward.1} parent=1 // pred_check
      _
    $region55: #{g_forward.1} parent=1 // pred_check_branch
      %391 = sbr.rel (0) target = $region57
    $region56: #{g_forward.1} parent=1 // pred_region
      _
    $region57: #{g_forward.1} parent=1 // pred_fallthru
      _
    %392 = vsyncpa [#allocation3], 1
    %393 = vsyncpa [#allocation5], 1

</llo_original>
